<compile_context>
chip_gen: v5e
topology: v5e:2x2
jax: 0.10.0
libtpu: 0.0.40
codegen_flags: <defaults>
</compile_context>

<pallas_src>
import numpy as np
import jax
import jax.numpy as jnp
from jax.experimental import pallas as pl
from jax.experimental.pallas import tpu as pltpu


def dense_transition_kernel(x_ref, scale_ref, shift_ref, w_ref, o_ref):
    # x_ref:     (1, 4, Cin, T)  four pixels of each 2x2 pool window stacked on
    #                            the leading axis; pooled-pixel index on lanes.
    # scale_ref: (Cin, 1)        folded BN scale = gamma / sqrt(var + eps)
    # shift_ref: (Cin, 1)        folded BN shift = beta - mean * scale
    # w_ref:     (Cout, Cin)     1x1 conv weight (f32 or bf16)
    # o_ref:     (1, Cout, T)
    x = x_ref[0]                                                    # (4, Cin, T)
    # BN + ReLU in f32 on the VPU (safe on v5e, which has no bf16 VPU path).
    y = jnp.maximum(x * scale_ref[...] + shift_ref[...], 0.0)
    # 2x2 stride-2 average pool = mean of the four stacked window pixels.
    # Pure VPU adds on identically-laid-out slabs -- no pooling matrix, no
    # extra MXU pass, no relayout.  Pool commutes with the 1x1 conv because
    # both are linear and the ReLU already happened.
    p = (y[0] + y[1] + y[2] + y[3]) * 0.25                          # (Cin, T)
    # Single matmul: (Cout, Cin) @ (Cin, T); operands may be bf16, f32 accum.
    z = jnp.dot(w_ref[...], p.astype(w_ref.dtype),
                preferred_element_type=jnp.float32)                 # (Cout, T)
    o_ref[0] = z.astype(o_ref.dtype)


def _pick_lane_tile(hwp: int, max_tile: int) -> int:
    """Largest tile of the pooled-pixel (lane) dim: full extent if it fits,
    else the biggest 128-multiple divisor <= max_tile (lane-aligned blocks)."""
    if hwp <= max_tile:
        return hwp
    t = (max_tile // 128) * 128
    while t >= 128:
        if hwp % t == 0:
            return t
        t -= 128
    return hwp  # fallback: single full block


def dense_transition(x_nchw, gamma, beta, running_mean, running_var, conv_w,
                     eps=1e-5, compute_dtype=jnp.float32, max_lane_tile=2048):
    """x_nchw: (N, Cin, H, W) float32; conv_w: (Cout, Cin, 1, 1).

    compute_dtype: dtype of the matmul operands (jnp.bfloat16 recommended on
    v6e/v7x; accumulation is always f32).
    """
    N, Cin, H, W = x_nchw.shape
    Cout = conv_w.shape[0]
    Hp, Wp = H // 2, W // 2
    HWp = Hp * Wp

    # Fold BatchNorm (inference, running stats) into per-channel scale/shift.
    scale = (gamma / jnp.sqrt(running_var + eps)).astype(jnp.float32)
    shift = (beta - running_mean * scale).astype(jnp.float32)
    scale2 = scale.reshape(Cin, 1)
    shift2 = shift.reshape(Cin, 1)

    # 1x1 conv weight (Cout, Cin, 1, 1) -> (Cout, Cin) matmul operand.
    w = conv_w.reshape(Cout, Cin).astype(compute_dtype)

    # Group each 2x2 pooling window on a leading axis, keep spatial on lanes:
    # (N, Cin, H, W) -> (N, 4, Cin, Hp*Wp).  Single XLA transpose (replaces the
    # v1 NCHW->NHWC transpose).  Crop handles odd H/W like AvgPool2d(2,2).
    xc = x_nchw[:, :, :2 * Hp, :2 * Wp].astype(jnp.float32)
    xg = xc.reshape(N, Cin, Hp, 2, Wp, 2)
    xg = jnp.transpose(xg, (0, 3, 5, 1, 2, 4)).reshape(N, 4, Cin, HWp)

    T = _pick_lane_tile(HWp, max_lane_tile)
    n_tiles = HWp // T

    out = pl.pallas_call(
        dense_transition_kernel,
        out_shape=jax.ShapeDtypeStruct((N, Cout, HWp), jnp.float32),
        grid_spec=pltpu.PrefetchScalarGridSpec(
            num_scalar_prefetch=0,
            grid=(N, n_tiles),
            in_specs=[
                pl.BlockSpec((1, 4, Cin, T), lambda b, t: (b, 0, 0, t)),
                pl.BlockSpec((Cin, 1), lambda b, t: (0, 0)),
                pl.BlockSpec((Cin, 1), lambda b, t: (0, 0)),
                pl.BlockSpec((Cout, Cin), lambda b, t: (0, 0)),
            ],
            out_specs=pl.BlockSpec((1, Cout, T), lambda b, t: (b, 0, t)),
        ),
        compiler_params=pltpu.CompilerParams(
            # Both axes independent: megacore / v7x 2-TC sharding.
            dimension_semantics=("parallel", "parallel"),
            # Explicit budget with headroom (<= ~48 MiB keeps v7x's 64 MiB
            # physical VMEM safe; well under v5e/v6e's 128 MiB).
            vmem_limit_bytes=48 * 1024 * 1024),
    )(xg, scale2, shift2, w)

    # (N, Cout, Hp*Wp) -> NCHW with a pure reshape (no output transpose).
    return out.reshape(N, Cout, Hp, Wp)


def dense_transition_reference(x, gamma, beta, mean, var, conv_w, eps=1e-5):
    """Plain-JAX reference matching PyTorch semantics (NCHW)."""
    scale = gamma / jnp.sqrt(var + eps)
    shift = beta - mean * scale
    y = x * scale[None, :, None, None] + shift[None, :, None, None]
    y = jnp.maximum(y, 0.0)
    w2d = conv_w.reshape(conv_w.shape[0], conv_w.shape[1])          # (Cout, Cin)
    z = jnp.einsum('nchw,oc->nohw', y, w2d)                          # 1x1 conv
    N, Co, H, W = z.shape
    z = z.reshape(N, Co, H // 2, 2, W // 2, 2).mean(axis=(3, 5))     # avg pool 2x2
    return z


if __name__ == "__main__":
    # Small shapes consistent with the module: in_channels=4, out_channels=2.
    N, Cin, H, W = 2, 4, 16, 16
    Cout = Cin // 2

    key = jax.random.PRNGKey(0)
    kx, kg, kb, km, kv, kw = jax.random.split(key, 6)

    x = jax.random.normal(kx, (N, Cin, H, W), dtype=jnp.float32)

    # Deterministic synthetic parameters (BatchNorm2d + Conv2d(1x1, bias=False)).
    gamma = 1.0 + 0.1 * jax.random.normal(kg, (Cin,), dtype=jnp.float32)
    beta = 0.1 * jax.random.normal(kb, (Cin,), dtype=jnp.float32)
    running_mean = 0.1 * jax.random.normal(km, (Cin,), dtype=jnp.float32)
    running_var = jax.random.uniform(kv, (Cin,), dtype=jnp.float32,
                                     minval=0.5, maxval=1.5)
    conv_w = jax.random.normal(kw, (Cout, Cin, 1, 1), dtype=jnp.float32) * 0.2

    ref = dense_transition_reference(x, gamma, beta, running_mean, running_var,
                                     conv_w)

    # Full-f32 path (v5e-friendly, tight tolerance).
    out = jax.block_until_ready(
        dense_transition(x, gamma, beta, running_mean, running_var, conv_w))
    assert out.shape == (N, Cout, H // 2, W // 2), out.shape
    np.testing.assert_allclose(np.asarray(out), np.asarray(ref),
                               rtol=1e-4, atol=1e-4)

    # bf16-matmul path (v6e/v7x MXU-native operands, f32 accumulation).
    out_bf16 = jax.block_until_ready(
        dense_transition(x, gamma, beta, running_mean, running_var, conv_w,
                         compute_dtype=jnp.bfloat16))
    np.testing.assert_allclose(np.asarray(out_bf16), np.asarray(ref),
                               rtol=2e-2, atol=2e-2)

    print("KERNEL_OK")
</pallas_src>

<mosaic_0001>
module attributes {stable_mosaic.version = 11 : i64} {
  func.func @dense_transition_kernel(%arg0: i32, %arg1: i32, %arg2: memref<1x4x4x64xf32, #tpu.memory_space<vmem>>, %arg3: memref<4x1xf32, #tpu.memory_space<vmem>>, %arg4: memref<4x1xf32, #tpu.memory_space<vmem>>, %arg5: memref<2x4xf32, #tpu.memory_space<vmem>>, %arg6: memref<1x2x64xf32, #tpu.memory_space<vmem>>) attributes {dimension_semantics = [#tpu.dimension_semantics<parallel>, #tpu.dimension_semantics<parallel>], iteration_bounds = array<i64: 2, 1>, scalar_prefetch = 0 : i64, scratch_operands = 0 : i64, tpu.core_type = #tpu.core_type<tc>, window_params = [{transform_indices = @transform_0, window_bounds = array<i64: 1, 4, 4, 64>}, {pipeline_mode = #tpu.pipeline_mode<synchronous>, transform_indices = @transform_1, window_bounds = array<i64: 4, 1>}, {pipeline_mode = #tpu.pipeline_mode<synchronous>, transform_indices = @transform_2, window_bounds = array<i64: 4, 1>}, {pipeline_mode = #tpu.pipeline_mode<synchronous>, transform_indices = @transform_3, window_bounds = array<i64: 2, 4>}, {transform_indices = @transform_4, window_bounds = array<i64: 1, 2, 64>}]} {
    %c0 = arith.constant 0 : index
    %c0_0 = arith.constant 0 : index
    %c0_1 = arith.constant 0 : index
    %c0_2 = arith.constant 0 : index
    %0 = vector.load %arg2[%c0, %c0_0, %c0_1, %c0_2] : memref<1x4x4x64xf32, #tpu.memory_space<vmem>>, vector<1x4x4x64xf32>
    %1 = vector.shape_cast %0 : vector<1x4x4x64xf32> to vector<4x4x64xf32>
    %c0_3 = arith.constant 0 : index
    %c0_4 = arith.constant 0 : index
    %2 = vector.load %arg3[%c0_3, %c0_4] : memref<4x1xf32, #tpu.memory_space<vmem>>, vector<4x1xf32>
    %3 = vector.shape_cast %2 : vector<4x1xf32> to vector<1x4x1xf32>
    %4 = vector.broadcast %3 : vector<1x4x1xf32> to vector<4x4x64xf32>
    %5 = arith.mulf %1, %4 : vector<4x4x64xf32>
    %c0_5 = arith.constant 0 : index
    %c0_6 = arith.constant 0 : index
    %6 = vector.load %arg4[%c0_5, %c0_6] : memref<4x1xf32, #tpu.memory_space<vmem>>, vector<4x1xf32>
    %7 = vector.shape_cast %6 : vector<4x1xf32> to vector<1x4x1xf32>
    %8 = vector.broadcast %7 : vector<1x4x1xf32> to vector<4x4x64xf32>
    %9 = arith.addf %5, %8 : vector<4x4x64xf32>
    %cst = arith.constant 0.000000e+00 : f32
    %10 = vector.broadcast %cst : f32 to vector<4x4x64xf32>
    %11 = arith.maximumf %9, %10 : vector<4x4x64xf32>
    %12 = vector.extract_strided_slice %11 {offsets = [0, 0, 0], sizes = [1, 4, 64], strides = [1, 1, 1]} : vector<4x4x64xf32> to vector<1x4x64xf32>
    %13 = vector.shape_cast %12 : vector<1x4x64xf32> to vector<4x64xf32>
    %14 = vector.extract_strided_slice %11 {offsets = [1, 0, 0], sizes = [1, 4, 64], strides = [1, 1, 1]} : vector<4x4x64xf32> to vector<1x4x64xf32>
    %15 = vector.shape_cast %14 : vector<1x4x64xf32> to vector<4x64xf32>
    %16 = arith.addf %13, %15 : vector<4x64xf32>
    %17 = vector.extract_strided_slice %11 {offsets = [2, 0, 0], sizes = [1, 4, 64], strides = [1, 1, 1]} : vector<4x4x64xf32> to vector<1x4x64xf32>
    %18 = vector.shape_cast %17 : vector<1x4x64xf32> to vector<4x64xf32>
    %19 = arith.addf %16, %18 : vector<4x64xf32>
    %20 = vector.extract_strided_slice %11 {offsets = [3, 0, 0], sizes = [1, 4, 64], strides = [1, 1, 1]} : vector<4x4x64xf32> to vector<1x4x64xf32>
    %21 = vector.shape_cast %20 : vector<1x4x64xf32> to vector<4x64xf32>
    %22 = arith.addf %19, %21 : vector<4x64xf32>
    %cst_7 = arith.constant 2.500000e-01 : f32
    %23 = vector.broadcast %cst_7 : f32 to vector<4x64xf32>
    %24 = arith.mulf %22, %23 : vector<4x64xf32>
    %c0_8 = arith.constant 0 : index
    %c0_9 = arith.constant 0 : index
    %25 = vector.load %arg5[%c0_8, %c0_9] : memref<2x4xf32, #tpu.memory_space<vmem>>, vector<2x4xf32>
    %cst_10 = arith.constant dense<0.000000e+00> : vector<2x64xf32>
    %26 = tpu.matmul %25, %24, %cst_10 {dimension_numbers = #tpu.dot_dimension_numbers<[1], [0], [0], [1], [0, 0, 1, 1], [], []>} : vector<2x4xf32>, vector<4x64xf32>, vector<2x64xf32> -> vector<2x64xf32>
    %c0_11 = arith.constant 0 : index
    %c0_12 = arith.constant 0 : index
    %c0_13 = arith.constant 0 : index
    %27 = vector.load %arg6[%c0_11, %c0_12, %c0_13] : memref<1x2x64xf32, #tpu.memory_space<vmem>>, vector<1x2x64xf32>
    %28 = vector.shape_cast %27 : vector<1x2x64xf32> to vector<2x64xf32>
    %29 = vector.shape_cast %26 : vector<2x64xf32> to vector<1x2x64xf32>
    tpu.vector_store %arg6[%c0_11, %c0_12, %c0_13], %29 {strides = array<i32>} : memref<1x2x64xf32, #tpu.memory_space<vmem>>, vector<1x2x64xf32>,
    return
  }
  func.func @transform_0(%arg0: i32, %arg1: i32) -> (i32, i32, i32, i32) {
    %c0_i32 = arith.constant 0 : i32
    %c0_i32_0 = arith.constant 0 : i32
    %c0_i32_1 = arith.constant 0 : i32
    return %arg0, %c0_i32, %c0_i32_0, %arg1 : i32, i32, i32, i32
  }
  func.func @transform_1(%arg0: i32, %arg1: i32) -> (i32, i32) {
    %c0_i32 = arith.constant 0 : i32
    %c0_i32_0 = arith.constant 0 : i32
    %c0_i32_1 = arith.constant 0 : i32
    return %c0_i32, %c0_i32_0 : i32, i32
  }
  func.func @transform_2(%arg0: i32, %arg1: i32) -> (i32, i32) {
    %c0_i32 = arith.constant 0 : i32
    %c0_i32_0 = arith.constant 0 : i32
    %c0_i32_1 = arith.constant 0 : i32
    return %c0_i32, %c0_i32_0 : i32, i32
  }
  func.func @transform_3(%arg0: i32, %arg1: i32) -> (i32, i32) {
    %c0_i32 = arith.constant 0 : i32
    %c0_i32_0 = arith.constant 0 : i32
    %c0_i32_1 = arith.constant 0 : i32
    return %c0_i32, %c0_i32_0 : i32, i32
  }
  func.func @transform_4(%arg0: i32, %arg1: i32) -> (i32, i32, i32) {
    %c0_i32 = arith.constant 0 : i32
    %c0_i32_0 = arith.constant 0 : i32
    return %arg0, %c0_i32, %arg1 : i32, i32, i32
  }
}

</mosaic_0001>

<llo_original>
// kernel: tpu_custom_call.1
$region0: #{tpu_custom_call.1}
  #allocation0 [shape = 'u32[]', space=smem, size = 0x4, offset = 0x4, fixed_abs, tag = 'smem constant byte address 0x4 - core index']
  #allocation1 [shape = 'u32[72,128]{1,0:T(1,128)}', space=vmem, size = 0x9000, scoped, tag = 'internal scratch']
  %s0 = inlined_call_operand.hbm [shape: f32[2,4,4,64], index: 0, kind: input, shape index: {}]
  %s1 = inlined_call_operand.vmem [shape: f32[4,1], index: 1, kind: input, shape index: {}]
  %s2 = inlined_call_operand.vmem [shape: f32[4,1], index: 2, kind: input, shape index: {}]
  %s3 = inlined_call_operand.vmem [shape: f32[2,4], index: 3, kind: input, shape index: {}]
  %s4 = inlined_call_operand.hbm [shape: f32[2,2,64], index: 4, kind: output, shape index: {}]
  %s5 = sld [smem:[#allocation0]]
  $region53: #{tpu_custom_call.1} parent=0
    _
  %s7 = ssub.s32 1, %s5
  %s8 = scalar_select 0, %s7, %s5
  $region1: #{tpu_custom_call.1} parent=0
    #allocation2 [shape = 'u8[16384]{0}', space=vmem, size = 0x4000, scoped, tag = 'input window, operand 0']
    #allocation3 [shape = 's32[2]{0}', space=sflag, size = 0x8, scoped, tag = 'scoped memory for tpu_custom_call.1']
    #allocation4 [shape = 's32[2]{0}', space=sflag, size = 0x8, scoped, tag = 'scoped memory for tpu_custom_call.1']
    #allocation5 [shape = 'u8[2048]{0}', space=vmem, size = 0x800, scoped, tag = 'output window, operand 0']
    %9 = vsyncpa [#allocation3], 0
    %s10 = scalar_lea.sflag [#allocation3], 1
    %11 = vsyncpa %s10, 0
    %12 = vsyncpa [#allocation4], 0
    %s13 = scalar_lea.sflag [#allocation4], 1
    %14 = vsyncpa %s13, 0
    loop: start=0, step=1, limit=4
    $region2: #{tpu_custom_call.1} parent=1 // loop_pre_header
      _
    $region3: #{tpu_custom_call.1} parent=1 // loop_header
      %s16 = sphi 0, %s20
      %p17 = scmp.ge.s32.totalorder %s16, 4
      %s23 = sphi 0, %s35
      %s24 = sphi 0, %s31
      %s25 = sphi 0, %s23
      %s26 = sphi 0, %s24
      %s27 = sphi 0, %s25
      %s28 = sphi 0, %s26
      %s40 = sphi 0, %s42
      %s43 = sphi 0, %s40
      %s44 = sphi 0, %s43
      %s60 = sphi 0, %s44
      %s64 = sphi 0, %s64
      %s66 = sphi 0, %s64
      %s67 = sphi 0, %s66
      %s81 = sphi 0, %s67
      %s85 = sphi 0, %s85
      %s87 = sphi 0, %s85
      %s88 = sphi 0, %s87
      %s102 = sphi 0, %s88
      %s106 = sphi 0, %s106
      %s108 = sphi 0, %s106
      %s109 = sphi 0, %s108
      %s123 = sphi 0, %s109
      %s131 = sphi 0, %s133
      %s134 = sphi 0, %s131
      %s135 = sphi 0, %s134
      %s151 = sphi 0, %s135
    $region4: #{tpu_custom_call.1} parent=1 // loop_header_branch
      %19 = sbr.rel (%p17) target = $region8
    $region5: #{tpu_custom_call.1} parent=1 // loop_body
      %s21 = ssub.s32 %s16, 1
      %s22 = ssub.s32 %s16, 2
      %s29 = sadd.s32 1, %s24
      %p30 = scmp.ge.s32.totalorder %s29, 1
      %s31 = scalar_select %p30, 0, %s29
      %s32 = sadd.s32 1, %s23
      %s33 = scalar_select %p30, %s32, %s23
      %p34 = scmp.ge.s32.totalorder %s33, 2
      %s35 = scalar_select %p34, 0, %s33
      %s36 = ssub.s32 %s23, %s35
      %s37 = ssub.s32 %s24, %s31
      %s38 = sor.u32 %s36, %s37
      %p39 = scmp.eq.s32.totalorder %s38, 0
      %s41 = sadd.s32 %s40, 1
      %s42 = scalar_select %p39, %s40, %s41
      %p45 = pneg %p39
      %p46 = scmp.eq.s32.totalorder %s16, 1
      %p47 = por %p45, %p46
      %p48 = scmp.ne.s32.totalorder %s40, %s43
      %p49 = scmp.eq.s32.totalorder %s16, 0
      %p50 = por %p48, %p49
      %p51 = scmp.ne.s32.totalorder %s40, %s43
      %p52 = scmp.eq.s32.totalorder %s21, 1
      %p53 = por %p51, %p52
      %p54 = scmp.ne.s32.totalorder %s43, %s44
      %p55 = scmp.eq.s32.totalorder %s21, 0
      %p56 = por %p54, %p55
      %p57 = scmp.ne.s32.totalorder %s43, %s44
      %p58 = scmp.eq.s32.totalorder %s22, 1
      %p59 = por %p57, %p58
      %p61 = scmp.ne.s32.totalorder %s44, %s60
      %p62 = scmp.eq.s32.totalorder %s22, 0
      %p63 = por %p61, %p62
      %s65 = sadd.s32 %s64, 1
      %p68 = scmp.eq.s32.totalorder %s16, 1
      %p69 = scmp.ne.s32.totalorder %s64, %s66
      %p70 = scmp.eq.s32.totalorder %s16, 0
      %p71 = por %p69, %p70
      %p72 = scmp.ne.s32.totalorder %s64, %s66
      %p73 = scmp.eq.s32.totalorder %s21, 1
      %p74 = por %p72, %p73
      %p75 = scmp.ne.s32.totalorder %s66, %s67
      %p76 = scmp.eq.s32.totalorder %s21, 0
      %p77 = por %p75, %p76
      %p78 = scmp.ne.s32.totalorder %s66, %s67
      %p79 = scmp.eq.s32.totalorder %s22, 1
      %p80 = por %p78, %p79
      %p82 = scmp.ne.s32.totalorder %s67, %s81
      %p83 = scmp.eq.s32.totalorder %s22, 0
      %p84 = por %p82, %p83
      %s86 = sadd.s32 %s85, 1
      %p89 = scmp.eq.s32.totalorder %s16, 1
      %p90 = scmp.ne.s32.totalorder %s85, %s87
      %p91 = scmp.eq.s32.totalorder %s16, 0
      %p92 = por %p90, %p91
      %p93 = scmp.ne.s32.totalorder %s85, %s87
      %p94 = scmp.eq.s32.totalorder %s21, 1
      %p95 = por %p93, %p94
      %p96 = scmp.ne.s32.totalorder %s87, %s88
      %p97 = scmp.eq.s32.totalorder %s21, 0
      %p98 = por %p96, %p97
      %p99 = scmp.ne.s32.totalorder %s87, %s88
      %p100 = scmp.eq.s32.totalorder %s22, 1
      %p101 = por %p99, %p100
      %p103 = scmp.ne.s32.totalorder %s88, %s102
      %p104 = scmp.eq.s32.totalorder %s22, 0
      %p105 = por %p103, %p104
      %s107 = sadd.s32 %s106, 1
      %p110 = scmp.eq.s32.totalorder %s16, 1
      %p111 = scmp.ne.s32.totalorder %s106, %s108
      %p112 = scmp.eq.s32.totalorder %s16, 0
      %p113 = por %p111, %p112
      %p114 = scmp.ne.s32.totalorder %s106, %s108
      %p115 = scmp.eq.s32.totalorder %s21, 1
      %p116 = por %p114, %p115
      %p117 = scmp.ne.s32.totalorder %s108, %s109
      %p118 = scmp.eq.s32.totalorder %s21, 0
      %p119 = por %p117, %p118
      %p120 = scmp.ne.s32.totalorder %s108, %s109
      %p121 = scmp.eq.s32.totalorder %s22, 1
      %p122 = por %p120, %p121
      %p124 = scmp.ne.s32.totalorder %s109, %s123
      %p125 = scmp.eq.s32.totalorder %s22, 0
      %p126 = por %p124, %p125
      %s127 = ssub.s32 %s23, %s35
      %s128 = ssub.s32 %s24, %s31
      %s129 = sor.u32 %s127, %s128
      %p130 = scmp.eq.s32.totalorder %s129, 0
      %s132 = sadd.s32 %s131, 1
      %s133 = scalar_select %p130, %s131, %s132
      %p136 = pneg %p130
      %p137 = scmp.eq.s32.totalorder %s16, 1
      %p138 = por %p136, %p137
      %p139 = scmp.ne.s32.totalorder %s131, %s134
      %p140 = scmp.eq.s32.totalorder %s16, 0
      %p141 = por %p139, %p140
      %p142 = scmp.ne.s32.totalorder %s131, %s134
      %p143 = scmp.eq.s32.totalorder %s21, 1
      %p144 = por %p142, %p143
      %p145 = scmp.ne.s32.totalorder %s134, %s135
      %p146 = scmp.eq.s32.totalorder %s21, 0
      %p147 = por %p145, %p146
      %p148 = scmp.ne.s32.totalorder %s134, %s135
      %p149 = scmp.eq.s32.totalorder %s22, 1
      %p150 = por %p148, %p149
      %p152 = scmp.ne.s32.totalorder %s135, %s151
      %p153 = scmp.eq.s32.totalorder %s22, 0
      %p154 = por %p152, %p153
      %p155 = scmp.le.s32.totalorder 1, %s16
      %p156 = scmp.lt.s32.totalorder %s16, 3
      %p157 = pnand %p155, %p156
      %p158 = pneg %p157
      // Predicated region
      $region9: #{tpu_custom_call.1} parent=5 // pred_check
        _
      $region10: #{tpu_custom_call.1} parent=5 // pred_check_branch
        %160 = sbr.rel (%p157) target = $region12
      $region11: #{tpu_custom_call.1} parent=5 // pred_region
        %s161 = ssub.s32 %s16, 1
        // Predicated region
        $region13: #{tpu_custom_call.1} parent=11 // pred_check
          %p162 = pneg %p77
        $region14: #{tpu_custom_call.1} parent=11 // pred_check_branch
          %164 = sbr.rel (%p162) target = $region16
        $region15: #{tpu_custom_call.1} parent=11 // pred_region
          _
        $region16: #{tpu_custom_call.1} parent=11 // pred_fallthru
          _
        // Predicated region
        $region17: #{tpu_custom_call.1} parent=11 // pred_check
          %p165 = pneg %p98
        $region18: #{tpu_custom_call.1} parent=11 // pred_check_branch
          %167 = sbr.rel (%p165) target = $region20
        $region19: #{tpu_custom_call.1} parent=11 // pred_region
          _
        $region20: #{tpu_custom_call.1} parent=11 // pred_fallthru
          _
        // Predicated region
        $region21: #{tpu_custom_call.1} parent=11 // pred_check
          %p168 = pneg %p119
        $region22: #{tpu_custom_call.1} parent=11 // pred_check_branch
          %170 = sbr.rel (%p168) target = $region24
        $region23: #{tpu_custom_call.1} parent=11 // pred_region
          _
        $region24: #{tpu_custom_call.1} parent=11 // pred_fallthru
          _
      $region12: #{tpu_custom_call.1} parent=5 // pred_fallthru
        _
      %p171 = scmp.lt.s32.totalorder %s16, 2
      // Predicated region
      $region25: #{tpu_custom_call.1} parent=5 // pred_check
        %p172 = pneg %p171
      $region26: #{tpu_custom_call.1} parent=5 // pred_check_branch
        %174 = sbr.rel (%p172) target = $region28
      $region27: #{tpu_custom_call.1} parent=5 // pred_region
        // Predicated region
        $region29: #{tpu_custom_call.1} parent=27 // pred_check
          %p175 = pneg %p50
        $region30: #{tpu_custom_call.1} parent=27 // pred_check_branch
          %177 = sbr.rel (%p175) target = $region32
        $region31: #{tpu_custom_call.1} parent=27 // pred_region
          %s178 = sand.u32 %s40, 1
          %s179 = scalar_lea.sflag [#allocation3], %s178
          %s180 = sand.u32 %s40, 1
          %s181 = smul.addr %s180, 16
          %s182 = scalar_lea.vmem [#allocation2], %s181
          %184 = vsyncadd %s179, 0
          %s185 = smul.addr %s23, 4
          %s186 = sadd.s32 %s24, %s185
          %s187 = smul.addr %s186, 4
          %s188 = scalar_lea.hbm %s0, %s187
          %s189 = sshll.u32 %s188, 4
          %s190 = int_to_ptr.hbm [resolvable:$true] %s189
          %s191 = sshll.u32 %s182, 4
          %s192 = int_to_ptr.vmem [resolvable:$true] %s191
          %197 = dma.hbm_to_vmem [thread:$0]  %s190, 256, %s192, %s179, 64, 64, 4
        $region32: #{tpu_custom_call.1} parent=27 // pred_fallthru
          _
      $region28: #{tpu_custom_call.1} parent=5 // pred_fallthru
        _
      %p198 = scmp.le.s32.totalorder 1, %s16
      %p199 = scmp.lt.s32.totalorder %s16, 3
      %p200 = pnand %p198, %p199
      %p201 = pneg %p200
      // Predicated region
      $region33: #{tpu_custom_call.1} parent=5 // pred_check
        _
      $region34: #{tpu_custom_call.1} parent=5 // pred_check_branch
        %203 = sbr.rel (%p200) target = $region36
      $region35: #{tpu_custom_call.1} parent=5 // pred_region
        %s204 = ssub.s32 %s16, 1
        %s205 = sand.u32 %s43, 1
        %s206 = scalar_lea.sflag [#allocation3], %s205
        %s207 = sand.u32 %s43, 1
        %s208 = smul.addr %s207, 16
        %s209 = scalar_lea.vmem [#allocation2], %s208
        // Predicated region
        $region37: #{tpu_custom_call.1} parent=35 // pred_check
          %p210 = pneg %p56
        $region38: #{tpu_custom_call.1} parent=35 // pred_check_branch
          %212 = sbr.rel (%p210) target = $region40
        $region39: #{tpu_custom_call.1} parent=35 // pred_region
          %214 = dma.done %s206, 256
        $region40: #{tpu_custom_call.1} parent=35 // pred_fallthru
          _
        %s215 = sand.u32 %s43, 1
        %s216 = scalar_lea.sflag [#allocation3], %s215
        %s217 = sand.u32 %s43, 1
        %s218 = smul.addr %s217, 16
        %s219 = scalar_lea.vmem [#allocation2], %s218
        %p220 = pneg %p56
        %p221 = pneg %p53
        %p222 = pneg %p77
        %p223 = pneg %p74
        %p224 = pneg %p98
        %p225 = pneg %p95
        %p226 = pneg %p119
        %p227 = pneg %p116
        %p228 = pneg %p147
        %p229 = pneg %p144
        %s230 = sand.u32 %s134, 1
        %s231 = scalar_lea.sflag [#allocation4], %s230
        %s232 = sand.u32 %s134, 1
        %s233 = smul.addr %s232, 2
        %s234 = scalar_lea.vmem [#allocation5], %s233
        %v235 = vld [vmem:[%s209] sm:$0xf]
        %v236 = vld [vmem:[%s209 + $0x4] sm:$0xf]
        %v237 = vld [vmem:[%s209 + $0x8] sm:$0xf]
        %v238 = vld [vmem:[%s209 + $0xc] sm:$0xf]
        %v239 = vld [vmem:[%s1] sm:$0xf]
        %241 = vset.pattern.permute.xlu0 0
        %242 = vperm.xlu0 %241, %v239
        %v243 = vpop.permute.xlu0 %242
        %v245 = vmul.f32 %v235, %v243
        %v246 = vmul.f32 %v236, %v243
        %v247 = vmul.f32 %v237, %v243
        %v248 = vmul.f32 %v238, %v243
        %v249 = vld [vmem:[%s2] sm:$0xf]
        %251 = vset.pattern.permute.xlu0 0
        %252 = vperm.xlu0 %251, %v249
        %v253 = vpop.permute.xlu0 %252
        %v255 = vadd.f32 %v245, %v253
        %v256 = vadd.f32 %v246, %v253
        %v257 = vadd.f32 %v247, %v253
        %v258 = vadd.f32 %v248, %v253
        %v259 = vmax.f32 %v255, 0.0
        %v260 = vmax.f32 %v256, 0.0
        %v261 = vmax.f32 %v257, 0.0
        %v262 = vmax.f32 %v258, 0.0
        %v263 = vadd.f32 %v259, %v260
        %v264 = vadd.f32 %v263, %v261
        %v265 = vadd.f32 %v264, %v262
        %v266 = vmul.f32 %v265, 0.25
        %v267 = vld [vmem:[%s3] sm:$0x3]
        %vm268 = vcmask 31744
        %v270 = vsel %vm268, %v267, 0
        %vm272 = vcmask 1043456
        %v274 = vsel %vm272, %v266, 0
        %276 = vmatpush.msra.mxu0 0.0
        %277 = vmatpush.msra.mxu0 0.0
        %278 = vmatpush.msra.mxu0 0.0
        %279 = vmatpush.msra.mxu0 0.0
        %280 = vmatpush.msra.mxu0 0.0
        %281 = vmatpush.msra.mxu0 0.0
        %282 = vmatpush.msra.mxu0 0.0
        %283 = vmatpush.msra.mxu0 0.0
        %284 = vmatpush.msra.mxu0 0.0
        %285 = vmatpush.msra.mxu0 0.0
        %286 = vmatpush.msra.mxu0 0.0
        %287 = vmatpush.msra.mxu0 0.0
        %288 = vmatpush.msra.mxu0 0.0
        %289 = vmatpush.msra.mxu0 0.0
        %290 = vmatpush.msra.mxu0 0.0
        %291 = vmatpush.msra.mxu0 %v274
        %292 = vmatmul.f32.gmra.mxu0 %v270
        %v293 = vpop.f32.mrf.mxu0
        %v294 = vadd.f32 0.0, %v293
        %295 = vdwg.mxu0
        %vm296 = vcmask 517120
        %297 = vst.msk [vmem:[%s234] sm:$0x3] %vm296, %v294
        %s298 = sand.u32 %s134, 1
        %s299 = scalar_lea.sflag [#allocation4], %s298
        %s300 = sand.u32 %s134, 1
        %s301 = smul.addr %s300, 2
        %s302 = scalar_lea.vmem [#allocation5], %s301
        // Predicated region
        $region41: #{tpu_custom_call.1} parent=35 // pred_check
          %p303 = pneg %p144
        $region42: #{tpu_custom_call.1} parent=35 // pred_check_branch
          %305 = sbr.rel (%p303) target = $region44
        $region43: #{tpu_custom_call.1} parent=35 // pred_region
          %307 = vsyncadd %s299, 0
          %s308 = sadd.s32 %s26, %s25
          %s309 = smul.addr %s308, 2
          %s310 = scalar_lea.hbm %s4, %s309
          %s312 = sshll.u32 %s302, 4
          %s313 = int_to_ptr.vmem [resolvable:$true] %s312
          %s314 = sshll.u32 %s310, 4
          %s315 = int_to_ptr.hbm [resolvable:$true] %s314
          %317 = dma.vmem_to_hbm [thread:$0]  %s313, 32, %s315, %s299
        $region44: #{tpu_custom_call.1} parent=35 // pred_fallthru
          _
      $region36: #{tpu_custom_call.1} parent=5 // pred_fallthru
        _
      %p318 = scmp.le.s32.totalorder 2, %s16
      // Predicated region
      $region45: #{tpu_custom_call.1} parent=5 // pred_check
        %p319 = pneg %p318
      $region46: #{tpu_custom_call.1} parent=5 // pred_check_branch
        %321 = sbr.rel (%p319) target = $region48
      $region47: #{tpu_custom_call.1} parent=5 // pred_region
        %s322 = ssub.s32 %s16, 2
        // Predicated region
        $region49: #{tpu_custom_call.1} parent=47 // pred_check
          %p323 = pneg %p150
        $region50: #{tpu_custom_call.1} parent=47 // pred_check_branch
          %325 = sbr.rel (%p323) target = $region52
        $region51: #{tpu_custom_call.1} parent=47 // pred_region
          %s326 = sand.u32 %s135, 1
          %s327 = scalar_lea.sflag [#allocation4], %s326
          %s328 = sand.u32 %s135, 1
          %s329 = smul.addr %s328, 2
          %s330 = scalar_lea.vmem [#allocation5], %s329
          %332 = dma.done %s327, 32
        $region52: #{tpu_custom_call.1} parent=47 // pred_fallthru
          _
      $region48: #{tpu_custom_call.1} parent=5 // pred_fallthru
        _
    $region6: #{tpu_custom_call.1} parent=1 // loop_footer
      %s20 = sadd.s32 1, %s16
    $region7: #{tpu_custom_call.1} parent=1 // loop_footer_branch
      %15 = sbr.rel target = $region3
    $region8: #{tpu_custom_call.1} parent=1 // loop_exit
      _
    %333 = vsyncpa [#allocation3], 1
    %s334 = scalar_lea.sflag [#allocation3], 1
    %335 = vsyncpa %s334, 1
    %336 = vsyncpa [#allocation4], 1
    %s337 = scalar_lea.sflag [#allocation4], 1
    %338 = vsyncpa %s337, 1

</llo_original>
